<compile_context>
chip_gen: v6e
topology: v6e:2x2x1
jax: 0.10.0
libtpu: 0.0.40
codegen_flags: <defaults>
</compile_context>

<pallas_src>
import functools

import jax
import jax.numpy as jnp
from jax.experimental import pallas as pl
from jax.experimental.pallas import tpu as pltpu


def _round_up(x, m):
    return ((x + m - 1) // m) * m


def critic_kernel(s_ref, a_ref, ws_ref, wa_ref, wmid_ref, w3_ref, aux_ref, q_ref):
    """Fused DDPG-critic forward for one batch tile.

    s_ref   : (Bt, S)       state tile (f32)
    a_ref   : (Bt, A)       action tile (f32)
    ws_ref  : (S, H)        state_layer weight (compute dtype)
    wa_ref  : (A, H)        action_layer weight
    wmid_ref: (3, H, H)     [w1[:H], w1[H:2H], w2]
    w3_ref  : (H, 128)      layer3 weight zero-padded to a full lane width
    aux_ref : (8, Hp) f32   row0=bs row1=ba row2=b1 row3=b2 row4=b3 (broadcast)
    q_ref   : (Bt, 128)     q value lives in column 0 (lane-dense store)
    """
    f32 = jnp.float32
    cd = ws_ref.dtype                       # MXU operand dtype (bf16 or f32)
    H = wmid_ref.shape[-1]

    # Lane-aligned bias views: every segment starts at lane 0 of its own row.
    bs = aux_ref[0:1, 0:H]
    ba = aux_ref[1:2, 0:H]
    b1 = aux_ref[2:3, 0:H]
    b2 = aux_ref[3:4, 0:H]
    b3 = aux_ref[4:5, 0:128]

    # state_layer / action_layer (bias-add + ReLU in f32).
    hs = jnp.maximum(
        jnp.dot(s_ref[...].astype(cd), ws_ref[...], preferred_element_type=f32) + bs,
        0.0)
    ha = jnp.maximum(
        jnp.dot(a_ref[...].astype(cd), wa_ref[...], preferred_element_type=f32) + ba,
        0.0)

    # layer1: concat([hs, ha]) @ w1 == hs @ w1[:H] + ha @ w1[H:]  (no concat).
    x = (jnp.dot(hs.astype(cd), wmid_ref[0], preferred_element_type=f32)
         + jnp.dot(ha.astype(cd), wmid_ref[1], preferred_element_type=f32))
    x = jnp.maximum(x + b1, 0.0)

    # layer2.
    x = jnp.maximum(
        jnp.dot(x.astype(cd), wmid_ref[2], preferred_element_type=f32) + b2, 0.0)

    # layer3 as an MXU matmul against the (H, 128)-padded weight -> lane-dense
    # unmasked store; the real q value is column 0.
    q = jnp.dot(x.astype(cd), w3_ref[...], preferred_element_type=f32) + b3
    q_ref[...] = q.astype(q_ref.dtype)


@functools.partial(jax.jit, static_argnames=("batch_block",))
def critic_forward(state, action, kp, *, batch_block=2048):
    """Run the fused critic kernel. kp = pack_params(init_params(...))."""
    state = state.astype(jnp.float32)
    action = action.astype(jnp.float32)
    B, S = state.shape
    A = action.shape[1]
    H = kp["ws"].shape[1]

    # Batch tiling: always a cdiv grid (padded tail, never whole-array VMEM
    # residency).  Small batches -> one tile.  Bigger batches -> at least two
    # tiles so the "parallel" axis can split across both TensorCores on v7x,
    # capped at batch_block rows to amortize the ~0.35us per-grid-step cost
    # while staying far below any scoped-VMEM limit.
    if B <= 512:
        block_b = B
    else:
        block_b = min(batch_block, _round_up(pl.cdiv(B, 2), 8))
    grid = (pl.cdiv(B, block_b),)

    flops = 2 * B * (S * H + A * H + 2 * H * H + H * H + H * 128)
    bytes_accessed = (
        state.size * 4 + action.size * 4 + B * 128 * 4
        + sum(int(kp[k].size) * kp[k].dtype.itemsize
              for k in ("ws", "wa", "w_mid", "w3", "aux")))
    cost = pl.CostEstimate(flops=flops, transcendentals=0,
                           bytes_accessed=bytes_accessed)

    row = lambda i: (i, 0)
    fix2 = lambda i: (0, 0)
    fix3 = lambda i: (0, 0, 0)

    q_pad = pl.pallas_call(
        critic_kernel,
        out_shape=jax.ShapeDtypeStruct((B, 128), jnp.float32),
        grid=grid,
        in_specs=[
            pl.BlockSpec((block_b, S), row),
            pl.BlockSpec((block_b, A), row),
            pl.BlockSpec(kp["ws"].shape, fix2),
            pl.BlockSpec(kp["wa"].shape, fix2),
            pl.BlockSpec(kp["w_mid"].shape, fix3),
            pl.BlockSpec(kp["w3"].shape, fix2),
            pl.BlockSpec(kp["aux"].shape, fix2),
        ],
        out_specs=pl.BlockSpec((block_b, 128), row),
        cost_estimate=cost,
        compiler_params=pltpu.CompilerParams(
            dimension_semantics=("parallel",)),
    )(state, action, kp["ws"], kp["wa"], kp["w_mid"], kp["w3"], kp["aux"])

    # q lives in column 0 of the lane-dense output slab.
    return q_pad[:, :1]


# --------------------------------------------------------------------------
# Parameter construction (mirrors the PyTorch init: xavier_uniform_, bias 0.01)
# --------------------------------------------------------------------------
def xavier_uniform(key, fan_in, fan_out):
    """Xavier-uniform init; returned already transposed as (fan_in, fan_out)."""
    bound = jnp.sqrt(6.0 / (fan_in + fan_out))
    return jax.random.uniform(
        key, (fan_in, fan_out), dtype=jnp.float32, minval=-bound, maxval=bound)


def init_params(key, state_dim, action_dim, hidden_dim):
    """Raw per-layer parameters (used by the pure-JAX references)."""
    ks = jax.random.split(key, 5)
    bias = lambda n: jnp.full((n,), 0.01, dtype=jnp.float32)
    return {
        "ws": xavier_uniform(ks[0], state_dim, hidden_dim),       # (S, H)
        "bs": bias(hidden_dim),
        "wa": xavier_uniform(ks[1], action_dim, hidden_dim),      # (A, H)
        "ba": bias(hidden_dim),
        "w1": xavier_uniform(ks[2], 2 * hidden_dim, hidden_dim),  # (2H, H)
        "b1": bias(hidden_dim),
        "w2": xavier_uniform(ks[3], hidden_dim, hidden_dim),      # (H, H)
        "b2": bias(hidden_dim),
        "w3": xavier_uniform(ks[4], hidden_dim, 1),               # (H, 1)
        "b3": bias(1),
    }


def pack_params(p, compute_dtype=jnp.bfloat16):
    """Pack raw params into the kernel's weight/aux buffers."""
    S, H = p["ws"].shape
    Hp = _round_up(H, 128)
    # layer1 split by rows (state-value half / action-value half) + layer2.
    w_mid = jnp.stack([p["w1"][:H], p["w1"][H:2 * H], p["w2"]], axis=0)  # (3,H,H)
    # layer3 weight zero-padded to a full 128-lane width (column 0 is real).
    w3 = jnp.zeros((H, 128), jnp.float32).at[:, 0].set(p["w3"][:, 0])
    # Lane-aligned bias pack: one segment per row, all starting at lane 0.
    aux = jnp.zeros((8, Hp), jnp.float32)
    aux = aux.at[0, :H].set(p["bs"])
    aux = aux.at[1, :H].set(p["ba"])
    aux = aux.at[2, :H].set(p["b1"])
    aux = aux.at[3, :H].set(p["b2"])
    aux = aux.at[4, :].set(p["b3"][0])
    return {
        "ws": p["ws"].astype(compute_dtype),
        "wa": p["wa"].astype(compute_dtype),
        "w_mid": w_mid.astype(compute_dtype),
        "w3": w3.astype(compute_dtype),
        "aux": aux,                                  # biases stay f32
    }


def critic_reference(state, action, p):
    """Pure-JAX f32 reference mirroring the PyTorch forward exactly."""
    hs = jax.nn.relu(state @ p["ws"] + p["bs"])
    ha = jax.nn.relu(action @ p["wa"] + p["ba"])
    concat = jnp.concatenate([hs, ha], axis=1)
    x = jax.nn.relu(concat @ p["w1"] + p["b1"])
    x = jax.nn.relu(x @ p["w2"] + p["b2"])
    return x @ p["w3"] + p["b3"]


def critic_reference_mixed(state, action, p, cd):
    """Reference with MXU operands rounded to `cd` and f32 accumulation
    (matches the kernel's bf16-operand / f32-accumulate numerics)."""
    f32 = jnp.float32
    up = lambda a: a.astype(cd).astype(f32)
    mdot = lambda x, w: jnp.dot(up(x), up(w))
    hs = jax.nn.relu(mdot(state, p["ws"]) + p["bs"])
    ha = jax.nn.relu(mdot(action, p["wa"]) + p["ba"])
    concat = jnp.concatenate([hs, ha], axis=1)
    x = jax.nn.relu(mdot(concat, p["w1"]) + p["b1"])
    x = jax.nn.relu(mdot(x, p["w2"]) + p["b2"])
    return mdot(x, p["w3"]) + p["b3"]


if __name__ == "__main__":
    state_dim, action_dim, hidden_dim = 16, 8, 32

    key = jax.random.PRNGKey(0)
    k_p, k_s, k_a, k_s2, k_a2 = jax.random.split(key, 5)
    params = init_params(k_p, state_dim, action_dim, hidden_dim)

    # --- Exact f32 check, small batch (single tile) ------------------------
    kp_f32 = pack_params(params, compute_dtype=jnp.float32)
    state = jax.random.normal(k_s, (8, state_dim), dtype=jnp.float32)
    action = jax.random.normal(k_a, (8, action_dim), dtype=jnp.float32)
    q = critic_forward(state, action, kp_f32)
    jax.block_until_ready(q)
    q_ref = critic_reference(state, action, params)
    assert q.shape == (8, 1)
    assert jnp.allclose(q, q_ref, atol=1e-5, rtol=1e-5), "f32 small-batch mismatch"

    # --- Exact f32 check, multi-tile grid with a non-divisible tail --------
    big = 2500   # not a multiple of the block -> exercises cdiv grid + padding
    state_b = jax.random.normal(k_s2, (big, state_dim), dtype=jnp.float32)
    action_b = jax.random.normal(k_a2, (big, action_dim), dtype=jnp.float32)
    q_b = critic_forward(state_b, action_b, kp_f32)
    jax.block_until_ready(q_b)
    q_b_ref = critic_reference(state_b, action_b, params)
    assert q_b.shape == (big, 1)
    assert jnp.allclose(q_b, q_b_ref, atol=1e-5, rtol=1e-5), "f32 big-batch mismatch"

    # --- bf16 MXU-operand path (perf default) ------------------------------
    kp_bf16 = pack_params(params, compute_dtype=jnp.bfloat16)
    q_bf = critic_forward(state_b, action_b, kp_bf16)
    jax.block_until_ready(q_bf)
    q_bf_ref = critic_reference_mixed(state_b, action_b, params, jnp.bfloat16)
    assert q_bf.shape == (big, 1)
    assert jnp.allclose(q_bf, q_bf_ref, atol=2e-3, rtol=2e-3), "bf16 mismatch"

    print("KERNEL_OK")
</pallas_src>

<mosaic_0001>
module attributes {stable_mosaic.version = 11 : i64} {
  func.func @critic_kernel(%arg0: i32, %arg1: memref<8x16xf32, #tpu.memory_space<vmem>>, %arg2: memref<8x8xf32, #tpu.memory_space<vmem>>, %arg3: memref<16x32xf32, #tpu.memory_space<vmem>>, %arg4: memref<8x32xf32, #tpu.memory_space<vmem>>, %arg5: memref<3x32x32xf32, #tpu.memory_space<vmem>>, %arg6: memref<32x128xf32, #tpu.memory_space<vmem>>, %arg7: memref<8x128xf32, #tpu.memory_space<vmem>>, %arg8: memref<8x128xf32, #tpu.memory_space<vmem>>) attributes {dimension_semantics = [#tpu.dimension_semantics<parallel>], iteration_bounds = array<i64: 1>, scalar_prefetch = 0 : i64, scratch_operands = 0 : i64, tpu.core_type = #tpu.core_type<tc>, window_params = [{transform_indices = @transform_0, window_bounds = array<i64: 8, 16>}, {transform_indices = @transform_1, window_bounds = array<i64: 8, 8>}, {pipeline_mode = #tpu.pipeline_mode<synchronous>, transform_indices = @transform_2, window_bounds = array<i64: 16, 32>}, {pipeline_mode = #tpu.pipeline_mode<synchronous>, transform_indices = @transform_3, window_bounds = array<i64: 8, 32>}, {pipeline_mode = #tpu.pipeline_mode<synchronous>, transform_indices = @transform_4, window_bounds = array<i64: 3, 32, 32>}, {pipeline_mode = #tpu.pipeline_mode<synchronous>, transform_indices = @transform_5, window_bounds = array<i64: 32, 128>}, {pipeline_mode = #tpu.pipeline_mode<synchronous>, transform_indices = @transform_6, window_bounds = array<i64: 8, 128>}, {transform_indices = @transform_7, window_bounds = array<i64: 8, 128>}]} {
    %c0 = arith.constant 0 : index
    %c0_0 = arith.constant 0 : index
    %0 = vector.load %arg7[%c0, %c0_0] : memref<8x128xf32, #tpu.memory_space<vmem>>, vector<1x32xf32>
    %c1 = arith.constant 1 : index
    %c0_1 = arith.constant 0 : index
    %1 = vector.load %arg7[%c1, %c0_1] : memref<8x128xf32, #tpu.memory_space<vmem>>, vector<1x32xf32>
    %c2 = arith.constant 2 : index
    %c0_2 = arith.constant 0 : index
    %2 = vector.load %arg7[%c2, %c0_2] : memref<8x128xf32, #tpu.memory_space<vmem>>, vector<1x32xf32>
    %c3 = arith.constant 3 : index
    %c0_3 = arith.constant 0 : index
    %3 = vector.load %arg7[%c3, %c0_3] : memref<8x128xf32, #tpu.memory_space<vmem>>, vector<1x32xf32>
    %c4 = arith.constant 4 : index
    %c0_4 = arith.constant 0 : index
    %4 = vector.load %arg7[%c4, %c0_4] : memref<8x128xf32, #tpu.memory_space<vmem>>, vector<1x128xf32>
    %c0_5 = arith.constant 0 : index
    %c0_6 = arith.constant 0 : index
    %5 = vector.load %arg1[%c0_5, %c0_6] : memref<8x16xf32, #tpu.memory_space<vmem>>, vector<8x16xf32>
    %c0_7 = arith.constant 0 : index
    %c0_8 = arith.constant 0 : index
    %6 = vector.load %arg3[%c0_7, %c0_8] : memref<16x32xf32, #tpu.memory_space<vmem>>, vector<16x32xf32>
    %cst = arith.constant dense<0.000000e+00> : vector<8x32xf32>
    %7 = tpu.matmul %5, %6, %cst {dimension_numbers = #tpu.dot_dimension_numbers<[1], [0], [0], [1], [0, 0, 1, 1], [], []>} : vector<8x16xf32>, vector<16x32xf32>, vector<8x32xf32> -> vector<8x32xf32>
    %8 = vector.broadcast %0 : vector<1x32xf32> to vector<8x32xf32>
    %9 = arith.addf %7, %8 : vector<8x32xf32>
    %cst_9 = arith.constant 0.000000e+00 : f32
    %10 = vector.broadcast %cst_9 : f32 to vector<8x32xf32>
    %11 = arith.maximumf %9, %10 : vector<8x32xf32>
    %c0_10 = arith.constant 0 : index
    %c0_11 = arith.constant 0 : index
    %12 = vector.load %arg2[%c0_10, %c0_11] : memref<8x8xf32, #tpu.memory_space<vmem>>, vector<8x8xf32>
    %c0_12 = arith.constant 0 : index
    %c0_13 = arith.constant 0 : index
    %13 = vector.load %arg4[%c0_12, %c0_13] : memref<8x32xf32, #tpu.memory_space<vmem>>, vector<8x32xf32>
    %cst_14 = arith.constant dense<0.000000e+00> : vector<8x32xf32>
    %14 = tpu.matmul %12, %13, %cst_14 {dimension_numbers = #tpu.dot_dimension_numbers<[1], [0], [0], [1], [0, 0, 1, 1], [], []>} : vector<8x8xf32>, vector<8x32xf32>, vector<8x32xf32> -> vector<8x32xf32>
    %15 = vector.broadcast %1 : vector<1x32xf32> to vector<8x32xf32>
    %16 = arith.addf %14, %15 : vector<8x32xf32>
    %cst_15 = arith.constant 0.000000e+00 : f32
    %17 = vector.broadcast %cst_15 : f32 to vector<8x32xf32>
    %18 = arith.maximumf %16, %17 : vector<8x32xf32>
    %c0_16 = arith.constant 0 : index
    %c0_17 = arith.constant 0 : index
    %c0_18 = arith.constant 0 : index
    %19 = vector.load %arg5[%c0_16, %c0_17, %c0_18] : memref<3x32x32xf32, #tpu.memory_space<vmem>>, vector<1x32x32xf32>
    %20 = vector.shape_cast %19 : vector<1x32x32xf32> to vector<32x32xf32>
    %cst_19 = arith.constant dense<0.000000e+00> : vector<8x32xf32>
    %21 = tpu.matmul %11, %20, %cst_19 {dimension_numbers = #tpu.dot_dimension_numbers<[1], [0], [0], [1], [0, 0, 1, 1], [], []>} : vector<8x32xf32>, vector<32x32xf32>, vector<8x32xf32> -> vector<8x32xf32>
    %c1_20 = arith.constant 1 : index
    %c0_21 = arith.constant 0 : index
    %c0_22 = arith.constant 0 : index
    %22 = vector.load %arg5[%c1_20, %c0_21, %c0_22] : memref<3x32x32xf32, #tpu.memory_space<vmem>>, vector<1x32x32xf32>
    %23 = vector.shape_cast %22 : vector<1x32x32xf32> to vector<32x32xf32>
    %cst_23 = arith.constant dense<0.000000e+00> : vector<8x32xf32>
    %24 = tpu.matmul %18, %23, %cst_23 {dimension_numbers = #tpu.dot_dimension_numbers<[1], [0], [0], [1], [0, 0, 1, 1], [], []>} : vector<8x32xf32>, vector<32x32xf32>, vector<8x32xf32> -> vector<8x32xf32>
    %25 = arith.addf %21, %24 : vector<8x32xf32>
    %26 = vector.broadcast %2 : vector<1x32xf32> to vector<8x32xf32>
    %27 = arith.addf %25, %26 : vector<8x32xf32>
    %cst_24 = arith.constant 0.000000e+00 : f32
    %28 = vector.broadcast %cst_24 : f32 to vector<8x32xf32>
    %29 = arith.maximumf %27, %28 : vector<8x32xf32>
    %c2_25 = arith.constant 2 : index
    %c0_26 = arith.constant 0 : index
    %c0_27 = arith.constant 0 : index
    %30 = vector.load %arg5[%c2_25, %c0_26, %c0_27] : memref<3x32x32xf32, #tpu.memory_space<vmem>>, vector<1x32x32xf32>
    %31 = vector.shape_cast %30 : vector<1x32x32xf32> to vector<32x32xf32>
    %cst_28 = arith.constant dense<0.000000e+00> : vector<8x32xf32>
    %32 = tpu.matmul %29, %31, %cst_28 {dimension_numbers = #tpu.dot_dimension_numbers<[1], [0], [0], [1], [0, 0, 1, 1], [], []>} : vector<8x32xf32>, vector<32x32xf32>, vector<8x32xf32> -> vector<8x32xf32>
    %33 = vector.broadcast %3 : vector<1x32xf32> to vector<8x32xf32>
    %34 = arith.addf %32, %33 : vector<8x32xf32>
    %cst_29 = arith.constant 0.000000e+00 : f32
    %35 = vector.broadcast %cst_29 : f32 to vector<8x32xf32>
    %36 = arith.maximumf %34, %35 : vector<8x32xf32>
    %c0_30 = arith.constant 0 : index
    %c0_31 = arith.constant 0 : index
    %37 = vector.load %arg6[%c0_30, %c0_31] : memref<32x128xf32, #tpu.memory_space<vmem>>, vector<32x128xf32>
    %cst_32 = arith.constant dense<0.000000e+00> : vector<8x128xf32>
    %38 = tpu.matmul %36, %37, %cst_32 {dimension_numbers = #tpu.dot_dimension_numbers<[1], [0], [0], [1], [0, 0, 1, 1], [], []>} : vector<8x32xf32>, vector<32x128xf32>, vector<8x128xf32> -> vector<8x128xf32>
    %39 = vector.broadcast %4 : vector<1x128xf32> to vector<8x128xf32>
    %40 = arith.addf %38, %39 : vector<8x128xf32>
    %c0_33 = arith.constant 0 : index
    %c0_34 = arith.constant 0 : index
    %41 = vector.load %arg8[%c0_33, %c0_34] : memref<8x128xf32, #tpu.memory_space<vmem>>, vector<8x128xf32>
    tpu.vector_store %arg8[%c0_33, %c0_34], %40 {strides = array<i32>} : memref<8x128xf32, #tpu.memory_space<vmem>>, vector<8x128xf32>,
    return
  }
  func.func @transform_0(%arg0: i32) -> (i32, i32) {
    %c0_i32 = arith.constant 0 : i32
    %c0_i32_0 = arith.constant 0 : i32
    return %arg0, %c0_i32 : i32, i32
  }
  func.func @transform_1(%arg0: i32) -> (i32, i32) {
    %c0_i32 = arith.constant 0 : i32
    %c0_i32_0 = arith.constant 0 : i32
    return %arg0, %c0_i32 : i32, i32
  }
  func.func @transform_2(%arg0: i32) -> (i32, i32) {
    %c0_i32 = arith.constant 0 : i32
    %c0_i32_0 = arith.constant 0 : i32
    %c0_i32_1 = arith.constant 0 : i32
    return %c0_i32, %c0_i32_0 : i32, i32
  }
  func.func @transform_3(%arg0: i32) -> (i32, i32) {
    %c0_i32 = arith.constant 0 : i32
    %c0_i32_0 = arith.constant 0 : i32
    %c0_i32_1 = arith.constant 0 : i32
    return %c0_i32, %c0_i32_0 : i32, i32
  }
  func.func @transform_4(%arg0: i32) -> (i32, i32, i32) {
    %c0_i32 = arith.constant 0 : i32
    %c0_i32_0 = arith.constant 0 : i32
    %c0_i32_1 = arith.constant 0 : i32
    %c0_i32_2 = arith.constant 0 : i32
    return %c0_i32, %c0_i32_0, %c0_i32_1 : i32, i32, i32
  }
  func.func @transform_5(%arg0: i32) -> (i32, i32) {
    %c0_i32 = arith.constant 0 : i32
    %c0_i32_0 = arith.constant 0 : i32
    %c0_i32_1 = arith.constant 0 : i32
    return %c0_i32, %c0_i32_0 : i32, i32
  }
  func.func @transform_6(%arg0: i32) -> (i32, i32) {
    %c0_i32 = arith.constant 0 : i32
    %c0_i32_0 = arith.constant 0 : i32
    %c0_i32_1 = arith.constant 0 : i32
    return %c0_i32, %c0_i32_0 : i32, i32
  }
  func.func @transform_7(%arg0: i32) -> (i32, i32) {
    %c0_i32 = arith.constant 0 : i32
    %c0_i32_0 = arith.constant 0 : i32
    return %arg0, %c0_i32 : i32, i32
  }
}

</mosaic_0001>

<llo_original>
// kernel: critic_forward.1
$region0: #{critic_forward.1}
  #allocation0 [shape = 'u32[]', space=smem, size = 0x4, offset = 0x4, fixed_abs, tag = 'smem constant byte address 0x4 - core index']
  #allocation1 [shape = 'u32[144,128]{1,0:T(1,128)}', space=vmem, size = 0x12000, scoped, tag = 'internal scratch']
  %s0 = inlined_call_operand.hbm [shape: f32[8,16], index: 0, kind: input, shape index: {}]
  %s1 = inlined_call_operand.hbm [shape: f32[8,8], index: 1, kind: input, shape index: {}]
  %s2 = inlined_call_operand.hbm [shape: f32[16,32], index: 2, kind: input, shape index: {}]
  %s3 = inlined_call_operand.vmem [shape: f32[8,32], index: 3, kind: input, shape index: {}]
  %s4 = inlined_call_operand.hbm [shape: f32[3,32,32], index: 4, kind: input, shape index: {}]
  %s5 = inlined_call_operand.hbm [shape: f32[32,128], index: 5, kind: input, shape index: {}]
  %s6 = inlined_call_operand.hbm [shape: f32[8,128], index: 6, kind: input, shape index: {}]
  %s7 = inlined_call_operand.vmem [shape: f32[8,128], index: 7, kind: output, shape index: {}]
  %s8 = sld [smem:[#allocation0]]
  $region62: #{critic_forward.1} parent=0
    _
  %s10 = ssub.s32 1, %s8
  %s11 = scalar_select 0, %s10, %s8
  $region1: #{critic_forward.1} parent=0
    #allocation2 [shape = 'u8[4096]{0}', space=vmem, size = 0x1000, scoped, tag = 'input window, operand 0, single buffered']
    #allocation3 [shape = 's32[1]{0}', space=sflag, size = 0x4, scoped, tag = 'scoped memory for critic_forward.1']
    #allocation4 [shape = 'u8[4096]{0}', space=vmem, size = 0x1000, scoped, tag = 'input window, operand 1, single buffered']
    #allocation5 [shape = 's32[1]{0}', space=sflag, size = 0x4, scoped, tag = 'scoped memory for critic_forward.1']
    #allocation6 [shape = 'u8[8192]{0}', space=vmem, size = 0x2000, scoped, tag = 'input window, operand 2, single buffered']
    #allocation7 [shape = 'u8[49152]{0}', space=vmem, size = 0xc000, scoped, tag = 'input window, operand 4, single buffered']
    #allocation8 [shape = 's32[1]{0}', space=sflag, size = 0x4, scoped, tag = 'scoped memory for critic_forward.1']
    #allocation9 [shape = 'u8[16384]{0}', space=vmem, size = 0x4000, scoped, tag = 'input window, operand 5, single buffered']
    #allocation10 [shape = 'u8[4096]{0}', space=vmem, size = 0x1000, scoped, tag = 'input window, operand 6, single buffered']
    #allocation11 [shape = 's32[1]{0}', space=sflag, size = 0x4, scoped, tag = 'scoped memory for critic_forward.1']
    %12 = vsyncpa [#allocation3], 0
    %13 = vsyncpa [#allocation5], 0
    %14 = vsyncpa [#allocation8], 0
    %15 = vsyncpa [#allocation11], 0
    // Predicated region
    $region2: #{critic_forward.1} parent=1 // pred_check
      _
    $region3: #{critic_forward.1} parent=1 // pred_check_branch
      %17 = sbr.rel (0) target = $region5
    $region4: #{critic_forward.1} parent=1 // pred_region
      %s19 = ssub.s32 128, 128
      %20 = vsyncadd [#allocation3], %s19
      %s22 = sshll.u32 [#allocation2], 4
      %s23 = int_to_ptr.vmem [resolvable:$true] %s22
      %25 = dma.hbm_to_vmem [thread:$0]  %s0, 128, %s23, [#allocation3]
    $region5: #{critic_forward.1} parent=1 // pred_fallthru
      _
    // Predicated region
    $region6: #{critic_forward.1} parent=1 // pred_check
      _
    $region7: #{critic_forward.1} parent=1 // pred_check_branch
      %27 = sbr.rel (0) target = $region9
    $region8: #{critic_forward.1} parent=1 // pred_region
      %s29 = ssub.s32 128, 128
      %30 = vsyncadd [#allocation5], %s29
      %s32 = sshll.u32 [#allocation4], 4
      %s33 = int_to_ptr.vmem [resolvable:$true] %s32
      %35 = dma.hbm_to_vmem [thread:$0]  %s1, 128, %s33, [#allocation5]
    $region9: #{critic_forward.1} parent=1 // pred_fallthru
      _
    // Predicated region
    $region10: #{critic_forward.1} parent=1 // pred_check
      _
    $region11: #{critic_forward.1} parent=1 // pred_check_branch
      %37 = sbr.rel (0) target = $region13
    $region12: #{critic_forward.1} parent=1 // pred_region
      %s39 = ssub.s32 256, 256
      %40 = vsyncadd [#allocation5], %s39
      %s41 = sshll.u32 [#allocation6], 4
      %s42 = int_to_ptr.vmem [resolvable:$true] %s41
      %47 = dma.hbm_to_vmem [thread:$0]  %s2, 256, %s42, [#allocation5], 128, 128, 8
    $region13: #{critic_forward.1} parent=1 // pred_fallthru
      _
    // Predicated region
    $region14: #{critic_forward.1} parent=1 // pred_check
      _
    $region15: #{critic_forward.1} parent=1 // pred_check_branch
      %49 = sbr.rel (0) target = $region17
    $region16: #{critic_forward.1} parent=1 // pred_region
      _
    $region17: #{critic_forward.1} parent=1 // pred_fallthru
      _
    // Predicated region
    $region18: #{critic_forward.1} parent=1 // pred_check
      _
    $region19: #{critic_forward.1} parent=1 // pred_check_branch
      %51 = sbr.rel (0) target = $region21
    $region20: #{critic_forward.1} parent=1 // pred_region
      %s53 = ssub.s32 1536, 1536
      %54 = vsyncadd [#allocation8], %s53
      %s55 = sshll.u32 [#allocation7], 4
      %s56 = int_to_ptr.vmem [resolvable:$true] %s55
      %61 = dma.hbm_to_vmem [thread:$0]  %s4, 1536, %s56, [#allocation8], 128, 128, 8
    $region21: #{critic_forward.1} parent=1 // pred_fallthru
      _
    // Predicated region
    $region22: #{critic_forward.1} parent=1 // pred_check
      _
    $region23: #{critic_forward.1} parent=1 // pred_check_branch
      %63 = sbr.rel (0) target = $region25
    $region24: #{critic_forward.1} parent=1 // pred_region
      %s65 = ssub.s32 512, 512
      %66 = vsyncadd [#allocation8], %s65
      %s67 = sshll.u32 [#allocation9], 4
      %s68 = int_to_ptr.vmem [resolvable:$true] %s67
      %73 = dma.hbm_to_vmem [thread:$0]  %s5, 512, %s68, [#allocation8], 128, 128, 8
    $region25: #{critic_forward.1} parent=1 // pred_fallthru
      _
    // Predicated region
    $region26: #{critic_forward.1} parent=1 // pred_check
      _
    $region27: #{critic_forward.1} parent=1 // pred_check_branch
      %75 = sbr.rel (0) target = $region29
    $region28: #{critic_forward.1} parent=1 // pred_region
      %s77 = ssub.s32 128, 128
      %78 = vsyncadd [#allocation11], %s77
      %s80 = sshll.u32 [#allocation10], 4
      %s81 = int_to_ptr.vmem [resolvable:$true] %s80
      %83 = dma.hbm_to_vmem [thread:$0]  %s6, 128, %s81, [#allocation11]
    $region29: #{critic_forward.1} parent=1 // pred_fallthru
      _
    // Predicated region
    $region30: #{critic_forward.1} parent=1 // pred_check
      _
    $region31: #{critic_forward.1} parent=1 // pred_check_branch
      %85 = sbr.rel (0) target = $region33
    $region32: #{critic_forward.1} parent=1 // pred_region
      %86 = dma.done [#allocation3], 128
    $region33: #{critic_forward.1} parent=1 // pred_fallthru
      _
    // Predicated region
    $region34: #{critic_forward.1} parent=1 // pred_check
      _
    $region35: #{critic_forward.1} parent=1 // pred_check_branch
      %88 = sbr.rel (0) target = $region37
    $region36: #{critic_forward.1} parent=1 // pred_region
      %89 = dma.done [#allocation5], 128
    $region37: #{critic_forward.1} parent=1 // pred_fallthru
      _
    // Predicated region
    $region38: #{critic_forward.1} parent=1 // pred_check
      _
    $region39: #{critic_forward.1} parent=1 // pred_check_branch
      %91 = sbr.rel (0) target = $region41
    $region40: #{critic_forward.1} parent=1 // pred_region
      %92 = dma.done [#allocation5], 256
    $region41: #{critic_forward.1} parent=1 // pred_fallthru
      _
    // Predicated region
    $region42: #{critic_forward.1} parent=1 // pred_check
      _
    $region43: #{critic_forward.1} parent=1 // pred_check_branch
      %94 = sbr.rel (0) target = $region45
    $region44: #{critic_forward.1} parent=1 // pred_region
      %95 = dma.done [#allocation8], 1536
    $region45: #{critic_forward.1} parent=1 // pred_fallthru
      _
    // Predicated region
    $region46: #{critic_forward.1} parent=1 // pred_check
      _
    $region47: #{critic_forward.1} parent=1 // pred_check_branch
      %97 = sbr.rel (0) target = $region49
    $region48: #{critic_forward.1} parent=1 // pred_region
      %98 = dma.done [#allocation8], 512
    $region49: #{critic_forward.1} parent=1 // pred_fallthru
      _
    // Predicated region
    $region50: #{critic_forward.1} parent=1 // pred_check
      _
    $region51: #{critic_forward.1} parent=1 // pred_check_branch
      %100 = sbr.rel (0) target = $region53
    $region52: #{critic_forward.1} parent=1 // pred_region
      %101 = dma.done [#allocation11], 128
    $region53: #{critic_forward.1} parent=1 // pred_fallthru
      _
    %v102 = vld [vmem:[#allocation10] sm:$0x1]
    %v103 = vld [vmem:[#allocation10 + $0x1] sm:$0x1]
    %v104 = vld [vmem:[#allocation10 + $0x2] sm:$0x1]
    %v105 = vld [vmem:[#allocation10 + $0x3] sm:$0x1]
    %v106 = vld [vmem:[#allocation10 + $0x4] sm:$0x1]
    %v107 = vld [vmem:[#allocation2] sm:$0xff]
    %v108 = vld [vmem:[#allocation6] sm:$0xff]
    %v109 = vld [vmem:[#allocation6 + $0x8] sm:$0xff]
    %v110 = vlaneseq
    %v111 = vshrl.u32 %v110, 7
    %v112 = vsub.s32 0, %v111
    %v113 = vrot.slane %v102, %v112
    %vm114 = vcmask 130048
    %v116 = vsel %vm114, %v107, 0
    %118 = vmatprep.subr.mxu0 0.0
    %119 = vmatpush1.msra.mxu0 0.0
    %120 = vmatprep.subr.mxu0 0.0
    %121 = vmatpush1.msra.mxu0 0.0
    %122 = vmatprep.subr.mxu0 0.0
    %123 = vmatpush1.msra.mxu0 0.0
    %124 = vmatprep.subr.mxu0 0.0
    %125 = vmatpush1.msra.mxu0 0.0
    %126 = vmatprep.subr.mxu0 0.0
    %127 = vmatpush1.msra.mxu0 0.0
    %128 = vmatprep.subr.mxu0 0.0
    %129 = vmatpush1.msra.mxu0 0.0
    %130 = vmatprep.subr.mxu0 0.0
    %131 = vmatpush1.msra.mxu0 0.0
    %132 = vmatprep.subr.mxu0 0.0
    %133 = vmatpush1.msra.mxu0 0.0
    %134 = vmatprep.subr.mxu0 0.0
    %135 = vmatpush1.msra.mxu0 0.0
    %136 = vmatprep.subr.mxu0 0.0
    %137 = vmatpush1.msra.mxu0 0.0
    %138 = vmatprep.subr.mxu0 0.0
    %139 = vmatpush1.msra.mxu0 0.0
    %140 = vmatprep.subr.mxu0 0.0
    %141 = vmatpush1.msra.mxu0 0.0
    %142 = vmatprep.subr.mxu0 0.0
    %143 = vmatpush1.msra.mxu0 0.0
    %144 = vmatprep.subr.mxu0 0.0
    %145 = vmatpush1.msra.mxu0 0.0
    %146 = vmatprep.subr.mxu0 0.0
    %147 = vmatpush1.msra.mxu0 %v109
    %148 = vmatprep.subr.mxu0 0.0
    %149 = vmatpush1.msra.mxu0 %v108
    %150 = vmatprep.subr.mxu0 0.0
    %151 = vmatpush2.msra.mxu0 0.0
    %152 = vmatprep.subr.mxu0 0.0
    %153 = vmatpush2.msra.mxu0 0.0
    %154 = vmatprep.subr.mxu0 0.0
    %155 = vmatpush2.msra.mxu0 0.0
    %156 = vmatprep.subr.mxu0 0.0
    %157 = vmatpush2.msra.mxu0 0.0
    %158 = vmatprep.subr.mxu0 0.0
    %159 = vmatpush2.msra.mxu0 0.0
    %160 = vmatprep.subr.mxu0 0.0
    %161 = vmatpush2.msra.mxu0 0.0
    %162 = vmatprep.subr.mxu0 0.0
    %163 = vmatpush2.msra.mxu0 0.0
    %164 = vmatprep.subr.mxu0 0.0
    %165 = vmatpush2.msra.mxu0 0.0
    %166 = vmatprep.subr.mxu0 0.0
    %167 = vmatpush2.msra.mxu0 0.0
    %168 = vmatprep.subr.mxu0 0.0
    %169 = vmatpush2.msra.mxu0 0.0
    %170 = vmatprep.subr.mxu0 0.0
    %171 = vmatpush2.msra.mxu0 0.0
    %172 = vmatprep.subr.mxu0 0.0
    %173 = vmatpush2.msra.mxu0 0.0
    %174 = vmatprep.subr.mxu0 0.0
    %175 = vmatpush2.msra.mxu0 0.0
    %176 = vmatprep.subr.mxu0 0.0
    %177 = vmatpush2.msra.mxu0 0.0
    %178 = vmatprep.subr.mxu0 0.0
    %179 = vmatpush2.msra.mxu0 0.0
    %180 = vmatprep.subr.mxu0 0.0
    %181 = vmatpush2.msra.mxu0 0.0
    %182 = vmatprep.mubr.f32.mxu0 0.0
    %183 = vmatmul.mubr.f32.gmra.mxu0 %v116
    %v184 = vpop.f32.mrf.mxu0
    %v185 = vadd.f32 %v113, %v184
    %v186 = vpop.f32.mrf.mxu0
    %187 = vdwg.mxu0
    %v188 = vmax.f32 %v185, 0.0
    %v189 = vld [vmem:[#allocation4] sm:$0xff]
    %v190 = vld [vmem:[%s3] sm:$0xff]
    %v191 = vlaneseq
    %v192 = vshrl.u32 %v191, 7
    %v193 = vsub.s32 0, %v192
    %v194 = vrot.slane %v103, %v193
    %vm195 = vcmask 64512
    %v197 = vsel %vm195, %v189, 0
    %199 = vmatprep.subr.mxu0 0.0
    %200 = vmatpush1.msra.mxu0 0.0
    %201 = vmatprep.subr.mxu0 0.0
    %202 = vmatpush1.msra.mxu0 0.0
    %203 = vmatprep.subr.mxu0 0.0
    %204 = vmatpush1.msra.mxu0 0.0
    %205 = vmatprep.subr.mxu0 0.0
    %206 = vmatpush1.msra.mxu0 0.0
    %207 = vmatprep.subr.mxu0 0.0
    %208 = vmatpush1.msra.mxu0 0.0
    %209 = vmatprep.subr.mxu0 0.0
    %210 = vmatpush1.msra.mxu0 0.0
    %211 = vmatprep.subr.mxu0 0.0
    %212 = vmatpush1.msra.mxu0 0.0
    %213 = vmatprep.subr.mxu0 0.0
    %214 = vmatpush1.msra.mxu0 0.0
    %215 = vmatprep.subr.mxu0 0.0
    %216 = vmatpush1.msra.mxu0 0.0
    %217 = vmatprep.subr.mxu0 0.0
    %218 = vmatpush1.msra.mxu0 0.0
    %219 = vmatprep.subr.mxu0 0.0
    %220 = vmatpush1.msra.mxu0 0.0
    %221 = vmatprep.subr.mxu0 0.0
    %222 = vmatpush1.msra.mxu0 0.0
    %223 = vmatprep.subr.mxu0 0.0
    %224 = vmatpush1.msra.mxu0 0.0
    %225 = vmatprep.subr.mxu0 0.0
    %226 = vmatpush1.msra.mxu0 0.0
    %227 = vmatprep.subr.mxu0 0.0
    %228 = vmatpush1.msra.mxu0 0.0
    %229 = vmatprep.subr.mxu0 0.0
    %230 = vmatpush1.msra.mxu0 %v190
    %231 = vmatprep.subr.mxu0 0.0
    %232 = vmatpush2.msra.mxu0 0.0
    %233 = vmatprep.subr.mxu0 0.0
    %234 = vmatpush2.msra.mxu0 0.0
    %235 = vmatprep.subr.mxu0 0.0
    %236 = vmatpush2.msra.mxu0 0.0
    %237 = vmatprep.subr.mxu0 0.0
    %238 = vmatpush2.msra.mxu0 0.0
    %239 = vmatprep.subr.mxu0 0.0
    %240 = vmatpush2.msra.mxu0 0.0
    %241 = vmatprep.subr.mxu0 0.0
    %242 = vmatpush2.msra.mxu0 0.0
    %243 = vmatprep.subr.mxu0 0.0
    %244 = vmatpush2.msra.mxu0 0.0
    %245 = vmatprep.subr.mxu0 0.0
    %246 = vmatpush2.msra.mxu0 0.0
    %247 = vmatprep.subr.mxu0 0.0
    %248 = vmatpush2.msra.mxu0 0.0
    %249 = vmatprep.subr.mxu0 0.0
    %250 = vmatpush2.msra.mxu0 0.0
    %251 = vmatprep.subr.mxu0 0.0
    %252 = vmatpush2.msra.mxu0 0.0
    %253 = vmatprep.subr.mxu0 0.0
    %254 = vmatpush2.msra.mxu0 0.0
    %255 = vmatprep.subr.mxu0 0.0
    %256 = vmatpush2.msra.mxu0 0.0
    %257 = vmatprep.subr.mxu0 0.0
    %258 = vmatpush2.msra.mxu0 0.0
    %259 = vmatprep.subr.mxu0 0.0
    %260 = vmatpush2.msra.mxu0 0.0
    %261 = vmatprep.subr.mxu0 0.0
    %262 = vmatpush2.msra.mxu0 0.0
    %263 = vmatprep.mubr.f32.mxu0 0.0
    %264 = vmatmul.mubr.f32.gmra.mxu0 %v197
    %v265 = vpop.f32.mrf.mxu0
    %v266 = vadd.f32 %v194, %v265
    %v267 = vpop.f32.mrf.mxu0
    %268 = vdwg.mxu0
    %v269 = vmax.f32 %v266, 0.0
    %v270 = vld [vmem:[#allocation7] sm:$0xff]
    %v271 = vld [vmem:[#allocation7 + $0x8] sm:$0xff]
    %v272 = vld [vmem:[#allocation7 + $0x10] sm:$0xff]
    %v273 = vld [vmem:[#allocation7 + $0x18] sm:$0xff]
    %s274 = scalar_lea.vmem [#allocation7], 32
    %v275 = vld [vmem:[%s274] sm:$0xff]
    %v276 = vld [vmem:[%s274 + $0x8] sm:$0xff]
    %v277 = vld [vmem:[%s274 + $0x10] sm:$0xff]
    %v278 = vld [vmem:[%s274 + $0x18] sm:$0xff]
    %vm279 = vcmask 261120
    %v281 = vsel %vm279, %v269, 0
    %283 = vmatprep.subr.mxu0 0.0
    %284 = vmatpush1.msra.mxu0 0.0
    %285 = vmatprep.subr.mxu0 0.0
    %286 = vmatpush1.msra.mxu0 0.0
    %287 = vmatprep.subr.mxu0 0.0
    %288 = vmatpush1.msra.mxu0 0.0
    %289 = vmatprep.subr.mxu0 0.0
    %290 = vmatpush1.msra.mxu0 0.0
    %291 = vmatprep.subr.mxu0 0.0
    %292 = vmatpush1.msra.mxu0 0.0
    %293 = vmatprep.subr.mxu0 0.0
    %294 = vmatpush1.msra.mxu0 0.0
    %295 = vmatprep.subr.mxu0 0.0
    %296 = vmatpush1.msra.mxu0 0.0
    %297 = vmatprep.subr.mxu0 0.0
    %298 = vmatpush1.msra.mxu0 0.0
    %299 = vmatprep.subr.mxu0 0.0
    %300 = vmatpush1.msra.mxu0 0.0
    %301 = vmatprep.subr.mxu0 0.0
    %302 = vmatpush1.msra.mxu0 0.0
    %303 = vmatprep.subr.mxu0 0.0
    %304 = vmatpush1.msra.mxu0 0.0
    %305 = vmatprep.subr.mxu0 0.0
    %306 = vmatpush1.msra.mxu0 0.0
    %307 = vmatprep.subr.mxu0 0.0
    %308 = vmatpush1.msra.mxu0 %v278
    %309 = vmatprep.subr.mxu0 0.0
    %310 = vmatpush1.msra.mxu0 %v277
    %311 = vmatprep.subr.mxu0 0.0
    %312 = vmatpush1.msra.mxu0 %v276
    %313 = vmatprep.subr.mxu0 0.0
    %314 = vmatpush1.msra.mxu0 %v275
    %315 = vmatprep.subr.mxu0 0.0
    %316 = vmatpush2.msra.mxu0 0.0
    %317 = vmatprep.subr.mxu0 0.0
    %318 = vmatpush2.msra.mxu0 0.0
    %319 = vmatprep.subr.mxu0 0.0
    %320 = vmatpush2.msra.mxu0 0.0
    %321 = vmatprep.subr.mxu0 0.0
    %322 = vmatpush2.msra.mxu0 0.0
    %323 = vmatprep.subr.mxu0 0.0
    %324 = vmatpush2.msra.mxu0 0.0
    %325 = vmatprep.subr.mxu0 0.0
    %326 = vmatpush2.msra.mxu0 0.0
    %327 = vmatprep.subr.mxu0 0.0
    %328 = vmatpush2.msra.mxu0 0.0
    %329 = vmatprep.subr.mxu0 0.0
    %330 = vmatpush2.msra.mxu0 0.0
    %331 = vmatprep.subr.mxu0 0.0
    %332 = vmatpush2.msra.mxu0 0.0
    %333 = vmatprep.subr.mxu0 0.0
    %334 = vmatpush2.msra.mxu0 0.0
    %335 = vmatprep.subr.mxu0 0.0
    %336 = vmatpush2.msra.mxu0 0.0
    %337 = vmatprep.subr.mxu0 0.0
    %338 = vmatpush2.msra.mxu0 0.0
    %339 = vmatprep.subr.mxu0 0.0
    %340 = vmatpush2.msra.mxu0 0.0
    %341 = vmatprep.subr.mxu0 0.0
    %342 = vmatpush2.msra.mxu0 0.0
    %343 = vmatprep.subr.mxu0 0.0
    %344 = vmatpush2.msra.mxu0 0.0
    %345 = vmatprep.subr.mxu0 0.0
    %346 = vmatpush2.msra.mxu0 0.0
    %347 = vmatprep.mubr.f32.mxu0 0.0
    %348 = vmatmul.mubr.f32.gmra.mxu0 %v281
    %v349 = vpop.f32.mrf.mxu0
    %v350 = vadd.f32 0.0, %v349
    %v351 = vpop.f32.mrf.mxu0
    %352 = vdwg.mxu0
    %v354 = vsel %vm279, %v188, 0
    %356 = vmatprep.subr.mxu0 0.0
    %357 = vmatpush1.msra.mxu0 0.0
    %358 = vmatprep.subr.mxu0 0.0
    %359 = vmatpush1.msra.mxu0 0.0
    %360 = vmatprep.subr.mxu0 0.0
    %361 = vmatpush1.msra.mxu0 0.0
    %362 = vmatprep.subr.mxu0 0.0
    %363 = vmatpush1.msra.mxu0 0.0
    %364 = vmatprep.subr.mxu0 0.0
    %365 = vmatpush1.msra.mxu0 0.0
    %366 = vmatprep.subr.mxu0 0.0
    %367 = vmatpush1.msra.mxu0 0.0
    %368 = vmatprep.subr.mxu0 0.0
    %369 = vmatpush1.msra.mxu0 0.0
    %370 = vmatprep.subr.mxu0 0.0
    %371 = vmatpush1.msra.mxu0 0.0
    %372 = vmatprep.subr.mxu0 0.0
    %373 = vmatpush1.msra.mxu0 0.0
    %374 = vmatprep.subr.mxu0 0.0
    %375 = vmatpush1.msra.mxu0 0.0
    %376 = vmatprep.subr.mxu0 0.0
    %377 = vmatpush1.msra.mxu0 0.0
    %378 = vmatprep.subr.mxu0 0.0
    %379 = vmatpush1.msra.mxu0 0.0
    %380 = vmatprep.subr.mxu0 0.0
    %381 = vmatpush1.msra.mxu0 %v273
    %382 = vmatprep.subr.mxu0 0.0
    %383 = vmatpush1.msra.mxu0 %v272
    %384 = vmatprep.subr.mxu0 0.0
    %385 = vmatpush1.msra.mxu0 %v271
    %386 = vmatprep.subr.mxu0 0.0
    %387 = vmatpush1.msra.mxu0 %v270
    %388 = vmatprep.subr.mxu0 0.0
    %389 = vmatpush2.msra.mxu0 0.0
    %390 = vmatprep.subr.mxu0 0.0
    %391 = vmatpush2.msra.mxu0 0.0
    %392 = vmatprep.subr.mxu0 0.0
    %393 = vmatpush2.msra.mxu0 0.0
    %394 = vmatprep.subr.mxu0 0.0
    %395 = vmatpush2.msra.mxu0 0.0
    %396 = vmatprep.subr.mxu0 0.0
    %397 = vmatpush2.msra.mxu0 0.0
    %398 = vmatprep.subr.mxu0 0.0
    %399 = vmatpush2.msra.mxu0 0.0
    %400 = vmatprep.subr.mxu0 0.0
    %401 = vmatpush2.msra.mxu0 0.0
    %402 = vmatprep.subr.mxu0 0.0
    %403 = vmatpush2.msra.mxu0 0.0
    %404 = vmatprep.subr.mxu0 0.0
    %405 = vmatpush2.msra.mxu0 0.0
    %406 = vmatprep.subr.mxu0 0.0
    %407 = vmatpush2.msra.mxu0 0.0
    %408 = vmatprep.subr.mxu0 0.0
    %409 = vmatpush2.msra.mxu0 0.0
    %410 = vmatprep.subr.mxu0 0.0
    %411 = vmatpush2.msra.mxu0 0.0
    %412 = vmatprep.subr.mxu0 0.0
    %413 = vmatpush2.msra.mxu0 0.0
    %414 = vmatprep.subr.mxu0 0.0
    %415 = vmatpush2.msra.mxu0 0.0
    %416 = vmatprep.subr.mxu0 0.0
    %417 = vmatpush2.msra.mxu0 0.0
    %418 = vmatprep.subr.mxu0 0.0
    %419 = vmatpush2.msra.mxu0 0.0
    %420 = vmatprep.mubr.f32.mxu0 0.0
    %421 = vmatmul.mubr.f32.gmra.mxu0 %v354
    %v422 = vpop.f32.mrf.mxu0
    %v423 = vadd.f32 %v350, %v422
    %v424 = vpop.f32.mrf.mxu0
    %425 = vdwg.mxu0
    %v426 = vlaneseq
    %v427 = vshrl.u32 %v426, 7
    %v428 = vsub.s32 0, %v427
    %v429 = vrot.slane %v104, %v428
    %v430 = vadd.f32 %v423, %v429
    %v431 = vmax.f32 %v430, 0.0
    %s432 = scalar_lea.vmem [#allocation7], 64
    %v433 = vld [vmem:[%s432] sm:$0xff]
    %v434 = vld [vmem:[%s432 + $0x8] sm:$0xff]
    %v435 = vld [vmem:[%s432 + $0x10] sm:$0xff]
    %v436 = vld [vmem:[%s432 + $0x18] sm:$0xff]
    %v437 = vlaneseq
    %v438 = vshrl.u32 %v437, 7
    %v439 = vsub.s32 0, %v438
    %v440 = vrot.slane %v105, %v439
    %v442 = vsel %vm279, %v431, 0
    %444 = vmatprep.subr.mxu0 0.0
    %445 = vmatpush1.msra.mxu0 0.0
    %446 = vmatprep.subr.mxu0 0.0
    %447 = vmatpush1.msra.mxu0 0.0
    %448 = vmatprep.subr.mxu0 0.0
    %449 = vmatpush1.msra.mxu0 0.0
    %450 = vmatprep.subr.mxu0 0.0
    %451 = vmatpush1.msra.mxu0 0.0
    %452 = vmatprep.subr.mxu0 0.0
    %453 = vmatpush1.msra.mxu0 0.0
    %454 = vmatprep.subr.mxu0 0.0
    %455 = vmatpush1.msra.mxu0 0.0
    %456 = vmatprep.subr.mxu0 0.0
    %457 = vmatpush1.msra.mxu0 0.0
    %458 = vmatprep.subr.mxu0 0.0
    %459 = vmatpush1.msra.mxu0 0.0
    %460 = vmatprep.subr.mxu0 0.0
    %461 = vmatpush1.msra.mxu0 0.0
    %462 = vmatprep.subr.mxu0 0.0
    %463 = vmatpush1.msra.mxu0 0.0
    %464 = vmatprep.subr.mxu0 0.0
    %465 = vmatpush1.msra.mxu0 0.0
    %466 = vmatprep.subr.mxu0 0.0
    %467 = vmatpush1.msra.mxu0 0.0
    %468 = vmatprep.subr.mxu0 0.0
    %469 = vmatpush1.msra.mxu0 %v436
    %470 = vmatprep.subr.mxu0 0.0
    %471 = vmatpush1.msra.mxu0 %v435
    %472 = vmatprep.subr.mxu0 0.0
    %473 = vmatpush1.msra.mxu0 %v434
    %474 = vmatprep.subr.mxu0 0.0
    %475 = vmatpush1.msra.mxu0 %v433
    %476 = vmatprep.subr.mxu0 0.0
    %477 = vmatpush2.msra.mxu0 0.0
    %478 = vmatprep.subr.mxu0 0.0
    %479 = vmatpush2.msra.mxu0 0.0
    %480 = vmatprep.subr.mxu0 0.0
    %481 = vmatpush2.msra.mxu0 0.0
    %482 = vmatprep.subr.mxu0 0.0
    %483 = vmatpush2.msra.mxu0 0.0
    %484 = vmatprep.subr.mxu0 0.0
    %485 = vmatpush2.msra.mxu0 0.0
    %486 = vmatprep.subr.mxu0 0.0
    %487 = vmatpush2.msra.mxu0 0.0
    %488 = vmatprep.subr.mxu0 0.0
    %489 = vmatpush2.msra.mxu0 0.0
    %490 = vmatprep.subr.mxu0 0.0
    %491 = vmatpush2.msra.mxu0 0.0
    %492 = vmatprep.subr.mxu0 0.0
    %493 = vmatpush2.msra.mxu0 0.0
    %494 = vmatprep.subr.mxu0 0.0
    %495 = vmatpush2.msra.mxu0 0.0
    %496 = vmatprep.subr.mxu0 0.0
    %497 = vmatpush2.msra.mxu0 0.0
    %498 = vmatprep.subr.mxu0 0.0
    %499 = vmatpush2.msra.mxu0 0.0
    %500 = vmatprep.subr.mxu0 0.0
    %501 = vmatpush2.msra.mxu0 0.0
    %502 = vmatprep.subr.mxu0 0.0
    %503 = vmatpush2.msra.mxu0 0.0
    %504 = vmatprep.subr.mxu0 0.0
    %505 = vmatpush2.msra.mxu0 0.0
    %506 = vmatprep.subr.mxu0 0.0
    %507 = vmatpush2.msra.mxu0 0.0
    %508 = vmatprep.mubr.f32.mxu0 0.0
    %509 = vmatmul.mubr.f32.gmra.mxu0 %v442
    %v510 = vpop.f32.mrf.mxu0
    %v511 = vadd.f32 %v440, %v510
    %v512 = vpop.f32.mrf.mxu0
    %513 = vdwg.mxu0
    %v514 = vmax.f32 %v511, 0.0
    %v515 = vld [vmem:[#allocation9] sm:$0xff]
    %v516 = vld [vmem:[#allocation9 + $0x8] sm:$0xff]
    %v517 = vld [vmem:[#allocation9 + $0x10] sm:$0xff]
    %v518 = vld [vmem:[#allocation9 + $0x18] sm:$0xff]
    %v519 = vlaneseq
    %v520 = vshrl.u32 %v519, 7
    %v521 = vsub.s32 0, %v520
    %v522 = vrot.slane %v106, %v521
    %v524 = vsel %vm279, %v514, 0
    %526 = vmatprep.subr.mxu0 0.0
    %527 = vmatpush1.msra.mxu0 0.0
    %528 = vmatprep.subr.mxu0 0.0
    %529 = vmatpush1.msra.mxu0 0.0
    %530 = vmatprep.subr.mxu0 0.0
    %531 = vmatpush1.msra.mxu0 0.0
    %532 = vmatprep.subr.mxu0 0.0
    %533 = vmatpush1.msra.mxu0 0.0
    %534 = vmatprep.subr.mxu0 0.0
    %535 = vmatpush1.msra.mxu0 0.0
    %536 = vmatprep.subr.mxu0 0.0
    %537 = vmatpush1.msra.mxu0 0.0
    %538 = vmatprep.subr.mxu0 0.0
    %539 = vmatpush1.msra.mxu0 0.0
    %540 = vmatprep.subr.mxu0 0.0
    %541 = vmatpush1.msra.mxu0 0.0
    %542 = vmatprep.subr.mxu0 0.0
    %543 = vmatpush1.msra.mxu0 0.0
    %544 = vmatprep.subr.mxu0 0.0
    %545 = vmatpush1.msra.mxu0 0.0
    %546 = vmatprep.subr.mxu0 0.0
    %547 = vmatpush1.msra.mxu0 0.0
    %548 = vmatprep.subr.mxu0 0.0
    %549 = vmatpush1.msra.mxu0 0.0
    %550 = vmatprep.subr.mxu0 0.0
    %551 = vmatpush1.msra.mxu0 %v518
    %552 = vmatprep.subr.mxu0 0.0
    %553 = vmatpush1.msra.mxu0 %v517
    %554 = vmatprep.subr.mxu0 0.0
    %555 = vmatpush1.msra.mxu0 %v516
    %556 = vmatprep.subr.mxu0 0.0
    %557 = vmatpush1.msra.mxu0 %v515
    %558 = vmatprep.subr.mxu0 0.0
    %559 = vmatpush2.msra.mxu0 0.0
    %560 = vmatprep.subr.mxu0 0.0
    %561 = vmatpush2.msra.mxu0 0.0
    %562 = vmatprep.subr.mxu0 0.0
    %563 = vmatpush2.msra.mxu0 0.0
    %564 = vmatprep.subr.mxu0 0.0
    %565 = vmatpush2.msra.mxu0 0.0
    %566 = vmatprep.subr.mxu0 0.0
    %567 = vmatpush2.msra.mxu0 0.0
    %568 = vmatprep.subr.mxu0 0.0
    %569 = vmatpush2.msra.mxu0 0.0
    %570 = vmatprep.subr.mxu0 0.0
    %571 = vmatpush2.msra.mxu0 0.0
    %572 = vmatprep.subr.mxu0 0.0
    %573 = vmatpush2.msra.mxu0 0.0
    %574 = vmatprep.subr.mxu0 0.0
    %575 = vmatpush2.msra.mxu0 0.0
    %576 = vmatprep.subr.mxu0 0.0
    %577 = vmatpush2.msra.mxu0 0.0
    %578 = vmatprep.subr.mxu0 0.0
    %579 = vmatpush2.msra.mxu0 0.0
    %580 = vmatprep.subr.mxu0 0.0
    %581 = vmatpush2.msra.mxu0 0.0
    %582 = vmatprep.subr.mxu0 0.0
    %583 = vmatpush2.msra.mxu0 0.0
    %584 = vmatprep.subr.mxu0 0.0
    %585 = vmatpush2.msra.mxu0 0.0
    %586 = vmatprep.subr.mxu0 0.0
    %587 = vmatpush2.msra.mxu0 0.0
    %588 = vmatprep.subr.mxu0 0.0
    %589 = vmatpush2.msra.mxu0 0.0
    %590 = vmatprep.mubr.f32.mxu0 0.0
    %591 = vmatmul.mubr.f32.gmra.mxu0 %v524
    %v592 = vpop.f32.mrf.mxu0
    %v593 = vadd.f32 %v522, %v592
    %v594 = vpop.f32.mrf.mxu0
    %595 = vdwg.mxu0
    %596 = vst [vmem:[%s7] sm:$0xff] %v593
    // Predicated region
    $region54: #{critic_forward.1} parent=1 // pred_check
      _
    $region55: #{critic_forward.1} parent=1 // pred_check_branch
      %598 = sbr.rel (0) target = $region57
    $region56: #{critic_forward.1} parent=1 // pred_region
      _
    $region57: #{critic_forward.1} parent=1 // pred_fallthru
      _
    // Predicated region
    $region58: #{critic_forward.1} parent=1 // pred_check
      _
    $region59: #{critic_forward.1} parent=1 // pred_check_branch
      %600 = sbr.rel (0) target = $region61
    $region60: #{critic_forward.1} parent=1 // pred_region
      _
    $region61: #{critic_forward.1} parent=1 // pred_fallthru
      _
    %601 = vsyncpa [#allocation3], 1
    %602 = vsyncpa [#allocation5], 1
    %603 = vsyncpa [#allocation8], 1
    %604 = vsyncpa [#allocation11], 1

</llo_original>
